<compile_context>
chip_gen: v5e
topology: v5e:2x2
jax: 0.10.0
libtpu: 0.0.40
codegen_flags: <defaults>
</compile_context>

<pallas_src>
import numpy as np
import jax
import jax.numpy as jnp
from jax import lax
from jax.experimental import pallas as pl
from jax.experimental.pallas import tpu as pltpu


# ----------------------------------------------------------------------------
# Deterministic filter construction (mirrors filter_weights from the module)
# ----------------------------------------------------------------------------
def _exponential_sum(x, n):
    nom = 1 - np.exp(1j * n * x)
    denom = 1 - np.exp(1j * x)
    return nom / denom


def _exponential_sum2(x, n1, n2):
    nom = np.exp(1j * n1 * x) - np.exp(1j * n2 * x)
    denom = 1 - np.exp(1j * x)
    return nom / denom


def _filter_weights(M, m, scale_factor):
    m2 = np.arange(0, M)
    freq_start = 1.0 / (2 * scale_factor)
    freq_end = 1 - freq_start
    with np.errstate(divide="ignore", invalid="ignore"):
        t1 = _exponential_sum((m - m2) * 2 * np.pi / M, M * freq_start)
        t3 = _exponential_sum2((m - m2) * 2 * np.pi / M, M * freq_end, M)
    t1[m - m2 == 0] = M * freq_start
    t3[m - m2 == 0] = M * freq_start
    return t1 + t3


def make_upscale_filter(M, scale_factor, window_size=5, kaiser=False, kbeta=14):
    K = window_size * 2 + 1
    tmp = _filter_weights(M, window_size, scale_factor)[:K]
    if kaiser:
        tmp = tmp * np.kaiser(K, kbeta)
    tmp = tmp / tmp.sum()
    # torch assigns the complex result into a float32 buffer -> real part kept
    w = np.zeros((K,), dtype=np.float32)
    w[:] = tmp.real.astype(np.float32)
    return w


# ----------------------------------------------------------------------------
# Fold reflect pad + K-tap cross-correlation along H into one (H, H) matrix
# ----------------------------------------------------------------------------
def _build_filter_matrix(H, weights, window_size):
    """A[h, j] such that out[h] = sum_j A[h, j] * x[j] reproduces
    F.conv2d(F.pad(x, reflect along H), (K,1) depthwise filter)."""
    K = 2 * window_size + 1
    assert H > window_size, "reflect padding requires H > window_size"
    A = np.zeros((H, H), dtype=np.float32)
    for h in range(H):
        for k in range(K):
            t = h + k - window_size          # source row in the unpadded input
            if t < 0:                        # torch 'reflect': no edge repeat
                t = -t
            elif t >= H:
                t = 2 * H - 2 - t
            A[h, t] += float(weights[k])
    return A


# ----------------------------------------------------------------------------
# Pallas kernels
# ----------------------------------------------------------------------------
def _filter_lane_kernel(a_ref, x_ref, o_ref):
    # a_ref: VMEM (H, H), resident across the grid.
    # x_ref/o_ref: VMEM (H, Lt) lane-dense blocks of the (H, N*C*W) layout.
    a = a_ref[...]
    x = x_ref[...]
    if x.dtype != a.dtype:
        x = x.astype(a.dtype)
    o_ref[...] = jnp.dot(a, x, preferred_element_type=jnp.float32).astype(o_ref.dtype)


def _filter_slab_kernel(a_ref, x_ref, o_ref):
    # a_ref: VMEM (H, H), resident across the grid.
    # x_ref/o_ref: VMEM (Bnc, H, Wt) blocks of flattened (n, c) slabs.
    a = a_ref[...]

    def body(b, carry):
        xb = x_ref[b]
        if xb.dtype != a.dtype:
            xb = xb.astype(a.dtype)
        o_ref[b] = jnp.dot(a, xb, preferred_element_type=jnp.float32).astype(o_ref.dtype)
        return carry

    lax.fori_loop(0, x_ref.shape[0], body, 0, unroll=True)


def _round_down(x, m):
    return (x // m) * m


# ----------------------------------------------------------------------------
# Wrapper
# ----------------------------------------------------------------------------
def upscale_filter_2d(x, weights, window_size, *, target_block_bytes=4 << 20):
    """Pallas forward of UpscaleFilter2d. x: (N, C, H, W), weights: (K,)."""
    N, C, H, W = x.shape
    K = 2 * window_size + 1
    assert weights.shape == (K,)
    assert H > window_size, "reflect padding requires H > window_size"

    # Native bf16 MXU path when x is bf16 (accumulation stays f32 either way).
    compute_dtype = jnp.bfloat16 if x.dtype == jnp.bfloat16 else jnp.float32
    A = jnp.asarray(
        _build_filter_matrix(H, np.asarray(weights), window_size), dtype=compute_dtype
    )
    a_bytes = H * H * jnp.dtype(compute_dtype).itemsize

    NC = N * C
    itemsize = jnp.dtype(x.dtype).itemsize
    # Keep scoped VMEM within v7x's 64 MiB physical VMEM (A is double-buffered
    # by the pipeline even though its index_map is constant).
    vmem_limit = 48 * 1024 * 1024

    if W < 128:
        # -------- lane-repack path: a W-wide lane dim < 128 would force masked
        # partial stores and waste most of every vreg.  Operate on (H, N*C*W).
        L = NC * W
        xt = jnp.transpose(x, (2, 0, 1, 3)).reshape(H, L)

        if L <= 128:
            Lt = L
        else:
            lanes = max(128, target_block_bytes // max(H * itemsize, 1))
            Lt = max(128, min(_round_down(L, 128), _round_down(lanes, 128)))
            if Lt >= 256:
                Lt = _round_down(Lt, 256)            # v6e/v7x MXU-friendly
            if pl.cdiv(L, Lt) < 2 and L >= 256:      # keep >=2 steps for 2 TCs
                Lt = max(128, _round_down((L + 1) // 2, 128))
        grid = (pl.cdiv(L, Lt),)

        out_t = pl.pallas_call(
            _filter_lane_kernel,
            out_shape=jax.ShapeDtypeStruct((H, L), x.dtype),
            grid_spec=pltpu.PrefetchScalarGridSpec(
                num_scalar_prefetch=0,
                grid=grid,
                in_specs=[
                    pl.BlockSpec((H, H), lambda j: (0, 0)),   # A, VMEM-resident
                    pl.BlockSpec((H, Lt), lambda j: (0, j)),
                ],
                out_specs=pl.BlockSpec((H, Lt), lambda j: (0, j)),
            ),
            compiler_params=pltpu.CompilerParams(
                dimension_semantics=("parallel",),
                vmem_limit_bytes=vmem_limit,
            ),
            cost_estimate=pl.CostEstimate(
                flops=int(2 * H * H * L),
                transcendentals=0,
                bytes_accessed=int(2 * H * L * itemsize + a_bytes),
            ),
        )(A, xt)
        return out_t.reshape(H, N, C, W).transpose(1, 2, 0, 3)

    # -------- slab path (W >= 128): contiguity-preserving reshape, no transpose.
    x2 = x.reshape(NC, H, W)

    Wt = min(512, _round_down(W, 128))
    if Wt >= 256:
        Wt = _round_down(Wt, 256)                    # v6e/v7x MXU-friendly tiles
    slab_bytes = H * Wt * itemsize
    Bnc = int(max(1, min(NC, 32, target_block_bytes // max(slab_bytes, 1))))
    # v7x has 2 TensorCores: avoid collapsing both parallel axes to one step.
    if pl.cdiv(NC, Bnc) < 2 and pl.cdiv(W, Wt) < 2 and NC >= 2:
        Bnc = (NC + 1) // 2

    grid = (pl.cdiv(NC, Bnc), pl.cdiv(W, Wt))

    out2 = pl.pallas_call(
        _filter_slab_kernel,
        out_shape=jax.ShapeDtypeStruct((NC, H, W), x.dtype),
        grid_spec=pltpu.PrefetchScalarGridSpec(
            num_scalar_prefetch=0,
            grid=grid,
            in_specs=[
                pl.BlockSpec((H, H), lambda i, j: (0, 0)),        # A, resident
                pl.BlockSpec((Bnc, H, Wt), lambda i, j: (i, 0, j)),
            ],
            out_specs=pl.BlockSpec((Bnc, H, Wt), lambda i, j: (i, 0, j)),
        ),
        compiler_params=pltpu.CompilerParams(
            dimension_semantics=("parallel", "parallel"),
            vmem_limit_bytes=vmem_limit,
        ),
        cost_estimate=pl.CostEstimate(
            # Dense-A FLOPs; use 2*(Ht+K-1)*H*W*NC if banded H-tiling lands.
            flops=int(2 * H * H * W * NC),
            transcendentals=0,
            bytes_accessed=int(2 * x.size * itemsize + a_bytes),
        ),
    )(A, x2)
    return out2.reshape(N, C, H, W)


# ----------------------------------------------------------------------------
# Pure-JAX reference (direct tap loop on the reflect-padded tensor)
# ----------------------------------------------------------------------------
def _reference(x, weights, window_size):
    H = x.shape[2]
    K = 2 * window_size + 1
    xpad = jnp.pad(
        x, ((0, 0), (0, 0), (window_size, window_size), (0, 0)), mode="reflect"
    )
    out = jnp.zeros(x.shape, jnp.float32)
    for k in range(K):
        out = out + weights[k] * xpad[:, :, k:k + H, :]
    return out.astype(x.dtype)


if __name__ == "__main__":
    # Module config
    M = 32
    scale_factor = 2
    window_size = 5

    weights = jnp.asarray(make_upscale_filter(M, scale_factor, window_size))

    key = jax.random.PRNGKey(0)
    k1, k2 = jax.random.split(key)

    # Lane-repack path (W < 128): the module-consistent small demo shape.
    x_small = jax.random.normal(k1, (2, 4, 16, 16), dtype=jnp.float32)
    out_small = jax.block_until_ready(upscale_filter_2d(x_small, weights, window_size))
    ref_small = _reference(x_small, weights, window_size)
    np.testing.assert_allclose(
        np.asarray(out_small), np.asarray(ref_small), rtol=1e-4, atol=1e-4
    )

    # Slab path (W >= 128): also validate the wide-image branch.
    x_wide = jax.random.normal(k2, (2, 3, 24, 256), dtype=jnp.float32)
    out_wide = jax.block_until_ready(upscale_filter_2d(x_wide, weights, window_size))
    ref_wide = _reference(x_wide, weights, window_size)
    np.testing.assert_allclose(
        np.asarray(out_wide), np.asarray(ref_wide), rtol=1e-4, atol=1e-4
    )

    print("KERNEL_OK")
</pallas_src>

<mosaic_0001>
module attributes {stable_mosaic.version = 11 : i64} {
  func.func @_filter_lane_kernel(%arg0: i32, %arg1: memref<16x16xf32, #tpu.memory_space<vmem>>, %arg2: memref<16x128xf32, #tpu.memory_space<vmem>>, %arg3: memref<16x128xf32, #tpu.memory_space<vmem>>) attributes {dimension_semantics = [#tpu.dimension_semantics<parallel>], iteration_bounds = array<i64: 1>, scalar_prefetch = 0 : i64, scratch_operands = 0 : i64, tpu.core_type = #tpu.core_type<tc>, window_params = [{pipeline_mode = #tpu.pipeline_mode<synchronous>, transform_indices = @transform_0, window_bounds = array<i64: 16, 16>}, {transform_indices = @transform_1, window_bounds = array<i64: 16, 128>}, {transform_indices = @transform_2, window_bounds = array<i64: 16, 128>}]} {
    %c0 = arith.constant 0 : index
    %c0_0 = arith.constant 0 : index
    %0 = vector.load %arg1[%c0, %c0_0] : memref<16x16xf32, #tpu.memory_space<vmem>>, vector<16x16xf32>
    %c0_1 = arith.constant 0 : index
    %c0_2 = arith.constant 0 : index
    %1 = vector.load %arg2[%c0_1, %c0_2] : memref<16x128xf32, #tpu.memory_space<vmem>>, vector<16x128xf32>
    %cst = arith.constant dense<0.000000e+00> : vector<16x128xf32>
    %2 = tpu.matmul %0, %1, %cst {dimension_numbers = #tpu.dot_dimension_numbers<[1], [0], [0], [1], [0, 0, 1, 1], [], []>} : vector<16x16xf32>, vector<16x128xf32>, vector<16x128xf32> -> vector<16x128xf32>
    %c0_3 = arith.constant 0 : index
    %c0_4 = arith.constant 0 : index
    %3 = vector.load %arg3[%c0_3, %c0_4] : memref<16x128xf32, #tpu.memory_space<vmem>>, vector<16x128xf32>
    tpu.vector_store %arg3[%c0_3, %c0_4], %2 {strides = array<i32>} : memref<16x128xf32, #tpu.memory_space<vmem>>, vector<16x128xf32>,
    return
  }
  func.func @transform_0(%arg0: i32) -> (i32, i32) {
    %c0_i32 = arith.constant 0 : i32
    %c0_i32_0 = arith.constant 0 : i32
    %c0_i32_1 = arith.constant 0 : i32
    return %c0_i32, %c0_i32_0 : i32, i32
  }
  func.func @transform_1(%arg0: i32) -> (i32, i32) {
    %c0_i32 = arith.constant 0 : i32
    %c0_i32_0 = arith.constant 0 : i32
    return %c0_i32, %arg0 : i32, i32
  }
  func.func @transform_2(%arg0: i32) -> (i32, i32) {
    %c0_i32 = arith.constant 0 : i32
    %c0_i32_0 = arith.constant 0 : i32
    return %c0_i32, %arg0 : i32, i32
  }
}

</mosaic_0001>

<llo_original>
// kernel: tpu_custom_call.1
$region0: #{tpu_custom_call.1}
  #allocation0 [shape = 'u32[]', space=smem, size = 0x4, offset = 0x4, fixed_abs, tag = 'smem constant byte address 0x4 - core index']
  #allocation1 [shape = 'u32[72,128]{1,0:T(1,128)}', space=vmem, size = 0x9000, scoped, tag = 'internal scratch']
  %s0 = inlined_call_operand.hbm [shape: f32[16,16], index: 0, kind: input, shape index: {}]
  %s1 = inlined_call_operand.hbm [shape: f32[16,128], index: 1, kind: input, shape index: {}]
  %s2 = inlined_call_operand.hbm [shape: f32[16,128], index: 2, kind: output, shape index: {}]
  %s3 = sld [smem:[#allocation0]]
  $region26: #{tpu_custom_call.1} parent=0
    _
  %s5 = ssub.s32 1, %s3
  %s6 = scalar_select 0, %s5, %s3
  $region1: #{tpu_custom_call.1} parent=0
    #allocation2 [shape = 'u8[8192]{0}', space=vmem, size = 0x2000, scoped, tag = 'input window, operand 0, single buffered']
    #allocation3 [shape = 's32[1]{0}', space=sflag, size = 0x4, scoped, tag = 'scoped memory for tpu_custom_call.1']
    #allocation4 [shape = 's32[1]{0}', space=sflag, size = 0x4, scoped, tag = 'scoped memory for tpu_custom_call.1']
    #allocation5 [shape = 'u8[8192]{0}', space=vmem, size = 0x2000, scoped, tag = 'input window, operand 1, single buffered']
    #allocation6 [shape = 's32[1]{0}', space=sflag, size = 0x4, scoped, tag = 'scoped memory for tpu_custom_call.1']
    #allocation7 [shape = 'u8[8192]{0}', space=vmem, size = 0x2000, scoped, tag = 'output window, operand 0, single buffered']
    %7 = vsyncpa [#allocation3], 0
    %8 = vsyncpa [#allocation6], 0
    %9 = vsyncpa [#allocation4], 0
    // Predicated region
    $region2: #{tpu_custom_call.1} parent=1 // pred_check
      _
    $region3: #{tpu_custom_call.1} parent=1 // pred_check_branch
      %11 = sbr.rel (0) target = $region5
    $region4: #{tpu_custom_call.1} parent=1 // pred_region
      %13 = vsyncadd [#allocation3], 0
      %s14 = sshll.u32 %s0, 4
      %s15 = int_to_ptr.hbm [resolvable:$true] %s14
      %s16 = sshll.u32 [#allocation2], 4
      %s17 = int_to_ptr.vmem [resolvable:$true] %s16
      %22 = dma.hbm_to_vmem [thread:$0]  %s15, 256, %s17, [#allocation3], 128, 128, 8
    $region5: #{tpu_custom_call.1} parent=1 // pred_fallthru
      _
    // Predicated region
    $region6: #{tpu_custom_call.1} parent=1 // pred_check
      _
    $region7: #{tpu_custom_call.1} parent=1 // pred_check_branch
      %24 = sbr.rel (0) target = $region9
    $region8: #{tpu_custom_call.1} parent=1 // pred_region
      %26 = vsyncadd [#allocation6], 0
      %s27 = sshll.u32 %s1, 4
      %s28 = int_to_ptr.hbm [resolvable:$true] %s27
      %s29 = sshll.u32 [#allocation5], 4
      %s30 = int_to_ptr.vmem [resolvable:$true] %s29
      %35 = dma.hbm_to_vmem [thread:$0]  %s28, 256, %s30, [#allocation6], 128, 128, 8
    $region9: #{tpu_custom_call.1} parent=1 // pred_fallthru
      _
    // Predicated region
    $region10: #{tpu_custom_call.1} parent=1 // pred_check
      _
    $region11: #{tpu_custom_call.1} parent=1 // pred_check_branch
      %37 = sbr.rel (0) target = $region13
    $region12: #{tpu_custom_call.1} parent=1 // pred_region
      %39 = dma.done [#allocation3], 256
    $region13: #{tpu_custom_call.1} parent=1 // pred_fallthru
      _
    // Predicated region
    $region14: #{tpu_custom_call.1} parent=1 // pred_check
      _
    $region15: #{tpu_custom_call.1} parent=1 // pred_check_branch
      %41 = sbr.rel (0) target = $region17
    $region16: #{tpu_custom_call.1} parent=1 // pred_region
      %43 = dma.done [#allocation6], 256
    $region17: #{tpu_custom_call.1} parent=1 // pred_fallthru
      _
    %v44 = vld [vmem:[#allocation2] sm:$0xff]
    %v45 = vld [vmem:[#allocation2 + $0x8] sm:$0xff]
    %v46 = vld [vmem:[#allocation5] sm:$0xff]
    %v47 = vld [vmem:[#allocation5 + $0x8] sm:$0xff]
    %vm48 = vcmask 130048
    %v50 = vsel %vm48, %v44, 0
    %v53 = vsel %vm48, %v45, 0
    %55 = vmatpush.msra.mxu0 0.0
    %56 = vmatpush.msra.mxu0 0.0
    %57 = vmatpush.msra.mxu0 0.0
    %58 = vmatpush.msra.mxu0 0.0
    %59 = vmatpush.msra.mxu0 0.0
    %60 = vmatpush.msra.mxu0 0.0
    %61 = vmatpush.msra.mxu0 0.0
    %62 = vmatpush.msra.mxu0 0.0
    %63 = vmatpush.msra.mxu0 0.0
    %64 = vmatpush.msra.mxu0 0.0
    %65 = vmatpush.msra.mxu0 0.0
    %66 = vmatpush.msra.mxu0 0.0
    %67 = vmatpush.msra.mxu0 0.0
    %68 = vmatpush.msra.mxu0 0.0
    %69 = vmatpush.msra.mxu0 %v47
    %70 = vmatpush.msra.mxu0 %v46
    %71 = vmatmul.f32.gmra.mxu0 %v50
    %v72 = vpop.f32.mrf.mxu0
    %v73 = vadd.f32 0.0, %v72
    %74 = vmatmul.f32.gmra.mxu0 %v53
    %v75 = vpop.f32.mrf.mxu0
    %v76 = vadd.f32 0.0, %v75
    %77 = vdwg.mxu0
    %78 = vst [vmem:[#allocation7] sm:$0xff] %v73
    %79 = vst [vmem:[#allocation7 + $0x8] sm:$0xff] %v76
    // Predicated region
    $region18: #{tpu_custom_call.1} parent=1 // pred_check
      _
    $region19: #{tpu_custom_call.1} parent=1 // pred_check_branch
      %81 = sbr.rel (0) target = $region21
    $region20: #{tpu_custom_call.1} parent=1 // pred_region
      %83 = vsyncadd [#allocation4], 0
      %s84 = sshll.u32 [#allocation7], 4
      %s85 = int_to_ptr.vmem [resolvable:$true] %s84
      %s86 = sshll.u32 %s2, 4
      %s87 = int_to_ptr.hbm [resolvable:$true] %s86
      %92 = dma.vmem_to_hbm [thread:$0]  %s85, 256, %s87, [#allocation4], 128, 128, 8
    $region21: #{tpu_custom_call.1} parent=1 // pred_fallthru
      _
    // Predicated region
    $region22: #{tpu_custom_call.1} parent=1 // pred_check
      _
    $region23: #{tpu_custom_call.1} parent=1 // pred_check_branch
      %94 = sbr.rel (0) target = $region25
    $region24: #{tpu_custom_call.1} parent=1 // pred_region
      %96 = dma.done [#allocation4], 256
    $region25: #{tpu_custom_call.1} parent=1 // pred_fallthru
      _
    %97 = vsyncpa [#allocation3], 1
    %98 = vsyncpa [#allocation6], 1
    %99 = vsyncpa [#allocation4], 1

</llo_original>
